<compile_context>
chip_gen: v5e
topology: v5e:2x2
jax: 0.10.0
libtpu: 0.0.40
codegen_flags: <defaults>
</compile_context>

<pallas_src>
import functools

import jax
import jax.numpy as jnp
from jax.experimental import pallas as pl
from jax.experimental.pallas import tpu as pltpu


_INV_SQRT2 = 0.7071067811865476
_SQRT_2_OVER_PI = 0.7978845608028654


def _gelu_exact(h):
    # Exact erf GELU (matches torch.nn.GELU() default).
    return 0.5 * h * (1.0 + jax.lax.erf(h * _INV_SQRT2))


def _gelu_tanh(h):
    # tanh approximation: the transcendental goes to the EUP slot, freeing the
    # VALU on v6e/v7x when the erf polynomial would rival MXU time.
    return 0.5 * h * (1.0 + jnp.tanh(_SQRT_2_OVER_PI * (h + 0.044715 * h * h * h)))


def _mlp_kernel(x_ref, w1_ref, b1_ref, w2_ref, b2_ref, o_ref, acc_ref, *,
                use_tanh_gelu):
    # x: (tm, D) input dtype | W1: (D, Hc) bf16 | b1: (1, Hc) f32
    # W2: (Hc, D) bf16       | b2: (1, D) f32   | acc: (tm, D) f32
    hk = pl.program_id(1)

    @pl.when(hk == 0)
    def _():
        acc_ref[...] = jnp.zeros_like(acc_ref)

    # Cast x to bf16 in-kernel (saves a separate full-HBM cast pass).
    x_bf = x_ref[...].astype(jnp.bfloat16)
    h = jnp.dot(x_bf, w1_ref[...],
                preferred_element_type=jnp.float32) + b1_ref[...]      # (tm, Hc) f32
    h = _gelu_tanh(h) if use_tanh_gelu else _gelu_exact(h)
    # TODO(synk): nn.Dropout (training-mode RNG masking) omitted — identity in eval mode.
    acc_ref[...] += jnp.dot(h.astype(jnp.bfloat16), w2_ref[...],
                            preferred_element_type=jnp.float32)        # (tm, D) f32

    @pl.when(hk == pl.num_programs(1) - 1)
    def _():
        o_ref[...] = (acc_ref[...] + b2_ref[...]).astype(o_ref.dtype)


def _round_up(a, b):
    return (a + b - 1) // b * b


def _vmem_capacity_bytes():
    try:
        return int(pltpu.get_tpu_info().vmem_capacity_bytes)
    except Exception:
        return 64 << 20   # conservative fallback (v7x per-TC VMEM)


def _pick_tile_m(M, vmem_cap):
    if M <= 256:
        return M                      # single tile == full M axis: always legal
    if vmem_cap >= (100 << 20):       # v5e / v6e (128 MiB VMEM): bigger tiles
        if M >= 8192:
            return 1024
        if M >= 2048:
            return 512
        return 256
    # v7x (64 MiB VMEM, 2 TensorCores): keep tiles modest so the "parallel"
    # M axis has several grid steps to split across cores and footprint fits.
    if M >= 4096:
        return 512
    return 256


def _pick_tile_h(d_hid, max_chunk=512):
    if d_hid <= max_chunk:
        return d_hid
    for c in (512, 384, 256, 128):
        if d_hid % c == 0:
            return c
    return d_hid   # no clean 128-multiple divisor: keep the hidden dim whole


def mlp_forward(x, w1, b1, w2, b2, *, use_tanh_gelu=False):
    """Fused MLP forward: gelu(x @ W1 + b1) @ W2 + b2  (dropout = identity).

    x:  (batch, seq, input_dim) — any float dtype; cast to bf16 inside kernel.
    w1: (input_dim, hidden_dim) — pass bf16 (convert once outside hot loops).
    b1: (1, hidden_dim); w2: (hidden_dim, input_dim); b2: (1, input_dim).
    """
    batch, seq, d_in = x.shape
    d_hid = w1.shape[1]
    M = batch * seq

    # Weights should already be bf16 (converted once by the caller); these are
    # no-ops in that case and only a correctness fallback otherwise.
    w1 = w1.astype(jnp.bfloat16)
    w2 = w2.astype(jnp.bfloat16)
    b1 = b1.astype(jnp.float32).reshape(1, d_hid)
    b2 = b2.astype(jnp.float32).reshape(1, d_in)

    x2d = x.reshape(M, d_in)

    vmem_cap = _vmem_capacity_bytes()
    tile_m = _pick_tile_m(M, vmem_cap)
    tile_h = _pick_tile_h(d_hid)

    grid = (pl.cdiv(M, tile_m), d_hid // tile_h)

    x_bytes = x2d.dtype.itemsize
    out_bytes = x.dtype.itemsize

    # VMEM footprint: double-buffered tiles, single-buffered b2, resident f32
    # accumulator, and a generous allowance for the fused bias+GELU+cast
    # temporaries that Mosaic materializes in internal scratch.
    vmem_bytes = (
        2 * tile_m * d_in * x_bytes          # x tiles
        + 2 * d_in * tile_h * 2              # W1 chunk (bf16)
        + 2 * tile_h * d_in * 2              # W2 chunk (bf16)
        + 2 * tile_h * 4 + d_in * 4          # b1 chunk, b2
        + 2 * tile_m * d_in * out_bytes      # out tiles
        + tile_m * d_in * 4                  # f32 accumulator scratch
        + 4 * tile_m * tile_h * 4            # h + GELU temporaries (f32)
        + (4 << 20)                          # headroom
    )
    vmem_limit = int(min(max(vmem_bytes, 16 << 20), int(vmem_cap * 0.75)))

    cost = pl.CostEstimate(
        flops=4 * M * d_in * d_hid,
        transcendentals=M * d_hid,
        bytes_accessed=(
            M * d_in * x_bytes               # x in (true dtype)
            + 2 * d_in * d_hid * 2           # W1 + W2 (bf16)
            + (d_hid + d_in) * 4             # biases
            + M * d_in * out_bytes           # out (true dtype)
        ),
    )

    const_mode = pl.Buffered(buffer_count=1)   # b2 index never changes

    kernel = functools.partial(_mlp_kernel, use_tanh_gelu=use_tanh_gelu)

    out2d = pl.pallas_call(
        kernel,
        out_shape=jax.ShapeDtypeStruct((M, d_in), x.dtype),
        grid_spec=pltpu.PrefetchScalarGridSpec(
            num_scalar_prefetch=0,
            grid=grid,
            in_specs=[
                pl.BlockSpec((tile_m, d_in), lambda i, k: (i, 0)),   # x (resident across H)
                pl.BlockSpec((d_in, tile_h), lambda i, k: (0, k)),   # W1 column chunk
                pl.BlockSpec((1, tile_h), lambda i, k: (0, k)),      # b1 chunk
                pl.BlockSpec((tile_h, d_in), lambda i, k: (k, 0)),   # W2 row chunk
                pl.BlockSpec((1, d_in), lambda i, k: (0, 0),
                             pipeline_mode=const_mode),              # b2
            ],
            out_specs=pl.BlockSpec((tile_m, d_in), lambda i, k: (i, 0)),
            scratch_shapes=[pltpu.VMEM((tile_m, d_in), jnp.float32)],
        ),
        compiler_params=pltpu.CompilerParams(
            dimension_semantics=("parallel", "arbitrary"),
            vmem_limit_bytes=vmem_limit,
        ),
        cost_estimate=cost,
    )(x2d, w1, b1, w2, b2)

    return out2d.reshape(batch, seq, d_in)


def _reference(x, w1, b1, w2, b2):
    h = jnp.dot(x, w1) + b1[0]
    h = jax.nn.gelu(h, approximate=False)
    return jnp.dot(h, w2) + b2[0]


if __name__ == "__main__":
    # Small shapes consistent with the module (tokens of dim input_dim).
    batch, seq = 2, 8
    input_dim, hidden_dim = 32, 64

    key = jax.random.PRNGKey(0)
    kx, kw1, kb1, kw2, kb2 = jax.random.split(key, 5)

    x = jax.random.normal(kx, (batch, seq, input_dim), dtype=jnp.float32)
    # nn.Linear-equivalent params, stored as (in, out) / (1, out).
    w1 = jax.random.normal(kw1, (input_dim, hidden_dim), dtype=jnp.float32) * 0.05
    b1 = jax.random.normal(kb1, (1, hidden_dim), dtype=jnp.float32) * 0.05
    w2 = jax.random.normal(kw2, (hidden_dim, input_dim), dtype=jnp.float32) * 0.05
    b2 = jax.random.normal(kb2, (1, input_dim), dtype=jnp.float32) * 0.05

    # Convert weights to bf16 ONCE (outside the per-call path) per perf review.
    w1_bf = w1.astype(jnp.bfloat16)
    w2_bf = w2.astype(jnp.bfloat16)
    b1_f32 = b1.astype(jnp.float32)
    b2_f32 = b2.astype(jnp.float32)

    out = mlp_forward(x, w1_bf, b1_f32, w2_bf, b2_f32)
    out = jax.block_until_ready(out)

    ref = _reference(x, w1, b1, w2, b2)
    assert out.shape == (batch, seq, input_dim)
    # bf16 MXU matmuls (f32 accumulation) vs f32 reference -> loosened tolerance.
    assert jnp.allclose(out, ref, atol=1e-2, rtol=5e-2), "mismatch vs reference"

    print("KERNEL_OK")
</pallas_src>

<mosaic_0001>
module attributes {stable_mosaic.version = 11 : i64} {
  func.func @_mlp_kernel(%arg0: i32, %arg1: i32, %arg2: memref<16x32xf32, #tpu.memory_space<vmem>>, %arg3: memref<32x64xbf16, #tpu.memory_space<vmem>>, %arg4: memref<1x64xf32, #tpu.memory_space<vmem>>, %arg5: memref<64x32xbf16, #tpu.memory_space<vmem>>, %arg6: memref<1x32xf32, #tpu.memory_space<vmem>>, %arg7: memref<16x32xf32, #tpu.memory_space<vmem>>, %arg8: memref<16x32xf32, #tpu.memory_space<vmem>>) attributes {dimension_semantics = [#tpu.dimension_semantics<parallel>, #tpu.dimension_semantics<arbitrary>], iteration_bounds = array<i64: 1, 1>, scalar_prefetch = 0 : i64, scratch_operands = 1 : i64, tpu.core_type = #tpu.core_type<tc>, window_params = [{transform_indices = @transform_0, window_bounds = array<i64: 16, 32>}, {transform_indices = @transform_1, window_bounds = array<i64: 32, 64>}, {transform_indices = @transform_2, window_bounds = array<i64: 1, 64>}, {transform_indices = @transform_3, window_bounds = array<i64: 64, 32>}, {pipeline_mode = #tpu.pipeline_mode<synchronous>, transform_indices = @transform_4, window_bounds = array<i64: 1, 32>}, {transform_indices = @transform_5, window_bounds = array<i64: 16, 32>}]} {
    %c0_i32 = arith.constant 0 : i32
    %0 = arith.cmpi eq, %arg1, %c0_i32 : i32
    %1 = arith.extui %0 : i1 to i32
    %c0_i32_0 = arith.constant 0 : i32
    %2 = arith.cmpi ne, %1, %c0_i32_0 : i32
    scf.if %2 {
      %cst_18 = arith.constant 0.000000e+00 : f32
      %27 = vector.broadcast %cst_18 : f32 to vector<16x32xf32>
      %c0_19 = arith.constant 0 : index
      %c0_20 = arith.constant 0 : index
      %28 = vector.load %arg8[%c0_19, %c0_20] : memref<16x32xf32, #tpu.memory_space<vmem>>, vector<16x32xf32>
      tpu.vector_store %arg8[%c0_19, %c0_20], %27 {strides = array<i32>} : memref<16x32xf32, #tpu.memory_space<vmem>>, vector<16x32xf32>,
    } else {
    }
    %c0 = arith.constant 0 : index
    %c0_1 = arith.constant 0 : index
    %3 = vector.load %arg2[%c0, %c0_1] : memref<16x32xf32, #tpu.memory_space<vmem>>, vector<16x32xf32>
    %4 = arith.truncf %3 : vector<16x32xf32> to vector<16x32xbf16>
    %c0_2 = arith.constant 0 : index
    %c0_3 = arith.constant 0 : index
    %5 = vector.load %arg3[%c0_2, %c0_3] : memref<32x64xbf16, #tpu.memory_space<vmem>>, vector<32x64xbf16>
    %cst = arith.constant dense<0.000000e+00> : vector<16x64xf32>
    %6 = tpu.matmul %4, %5, %cst {dimension_numbers = #tpu.dot_dimension_numbers<[1], [0], [0], [1], [0, 0, 1, 1], [], []>} : vector<16x32xbf16>, vector<32x64xbf16>, vector<16x64xf32> -> vector<16x64xf32>
    %c0_4 = arith.constant 0 : index
    %c0_5 = arith.constant 0 : index
    %7 = vector.load %arg4[%c0_4, %c0_5] : memref<1x64xf32, #tpu.memory_space<vmem>>, vector<1x64xf32>
    %8 = vector.broadcast %7 : vector<1x64xf32> to vector<16x64xf32>
    %9 = arith.addf %6, %8 : vector<16x64xf32>
    %cst_6 = arith.constant 5.000000e-01 : f32
    %10 = vector.broadcast %cst_6 : f32 to vector<16x64xf32>
    %11 = arith.mulf %10, %9 : vector<16x64xf32>
    %cst_7 = arith.constant 0.707106769 : f32
    %12 = vector.broadcast %cst_7 : f32 to vector<16x64xf32>
    %13 = arith.mulf %9, %12 : vector<16x64xf32>
    %14 = math.erf %13 : vector<16x64xf32>
    %cst_8 = arith.constant 1.000000e+00 : f32
    %15 = vector.broadcast %cst_8 : f32 to vector<16x64xf32>
    %16 = arith.addf %15, %14 : vector<16x64xf32>
    %17 = arith.mulf %11, %16 : vector<16x64xf32>
    %c0_9 = arith.constant 0 : index
    %c0_10 = arith.constant 0 : index
    %18 = vector.load %arg8[%c0_9, %c0_10] : memref<16x32xf32, #tpu.memory_space<vmem>>, vector<16x32xf32>
    %19 = arith.truncf %17 : vector<16x64xf32> to vector<16x64xbf16>
    %c0_11 = arith.constant 0 : index
    %c0_12 = arith.constant 0 : index
    %20 = vector.load %arg5[%c0_11, %c0_12] : memref<64x32xbf16, #tpu.memory_space<vmem>>, vector<64x32xbf16>
    %cst_13 = arith.constant dense<0.000000e+00> : vector<16x32xf32>
    %21 = tpu.matmul %19, %20, %cst_13 {dimension_numbers = #tpu.dot_dimension_numbers<[1], [0], [0], [1], [0, 0, 1, 1], [], []>} : vector<16x64xbf16>, vector<64x32xbf16>, vector<16x32xf32> -> vector<16x32xf32>
    %22 = arith.addf %18, %21 : vector<16x32xf32>
    %c0_14 = arith.constant 0 : index
    %c0_15 = arith.constant 0 : index
    %23 = vector.load %arg8[%c0_14, %c0_15] : memref<16x32xf32, #tpu.memory_space<vmem>>, vector<16x32xf32>
    tpu.vector_store %arg8[%c0_14, %c0_15], %22 {strides = array<i32>} : memref<16x32xf32, #tpu.memory_space<vmem>>, vector<16x32xf32>,
    %c0_i32_16 = arith.constant 0 : i32
    %24 = arith.cmpi eq, %arg1, %c0_i32_16 : i32
    %25 = arith.extui %24 : i1 to i32
    %c0_i32_17 = arith.constant 0 : i32
    %26 = arith.cmpi ne, %25, %c0_i32_17 : i32
    scf.if %26 {
      %c0_18 = arith.constant 0 : index
      %c0_19 = arith.constant 0 : index
      %27 = vector.load %arg8[%c0_18, %c0_19] : memref<16x32xf32, #tpu.memory_space<vmem>>, vector<16x32xf32>
      %c0_20 = arith.constant 0 : index
      %c0_21 = arith.constant 0 : index
      %28 = vector.load %arg6[%c0_20, %c0_21] : memref<1x32xf32, #tpu.memory_space<vmem>>, vector<1x32xf32>
      %29 = vector.broadcast %28 : vector<1x32xf32> to vector<16x32xf32>
      %30 = arith.addf %27, %29 : vector<16x32xf32>
      %c0_22 = arith.constant 0 : index
      %c0_23 = arith.constant 0 : index
      %31 = vector.load %arg7[%c0_22, %c0_23] : memref<16x32xf32, #tpu.memory_space<vmem>>, vector<16x32xf32>
      tpu.vector_store %arg7[%c0_22, %c0_23], %30 {strides = array<i32>} : memref<16x32xf32, #tpu.memory_space<vmem>>, vector<16x32xf32>,
    } else {
    }
    return
  }
  func.func @transform_0(%arg0: i32, %arg1: i32) -> (i32, i32) {
    %c0_i32 = arith.constant 0 : i32
    %c0_i32_0 = arith.constant 0 : i32
    return %arg0, %c0_i32 : i32, i32
  }
  func.func @transform_1(%arg0: i32, %arg1: i32) -> (i32, i32) {
    %c0_i32 = arith.constant 0 : i32
    %c0_i32_0 = arith.constant 0 : i32
    return %c0_i32, %arg1 : i32, i32
  }
  func.func @transform_2(%arg0: i32, %arg1: i32) -> (i32, i32) {
    %c0_i32 = arith.constant 0 : i32
    %c0_i32_0 = arith.constant 0 : i32
    return %c0_i32, %arg1 : i32, i32
  }
  func.func @transform_3(%arg0: i32, %arg1: i32) -> (i32, i32) {
    %c0_i32 = arith.constant 0 : i32
    %c0_i32_0 = arith.constant 0 : i32
    return %arg1, %c0_i32 : i32, i32
  }
  func.func @transform_4(%arg0: i32, %arg1: i32) -> (i32, i32) {
    %c0_i32 = arith.constant 0 : i32
    %c0_i32_0 = arith.constant 0 : i32
    %c0_i32_1 = arith.constant 0 : i32
    return %c0_i32, %c0_i32_0 : i32, i32
  }
  func.func @transform_5(%arg0: i32, %arg1: i32) -> (i32, i32) {
    %c0_i32 = arith.constant 0 : i32
    %c0_i32_0 = arith.constant 0 : i32
    return %arg0, %c0_i32 : i32, i32
  }
}

</mosaic_0001>

<llo_original>
// kernel: tpu_custom_call.1
$region0: #{tpu_custom_call.1}
  #allocation0 [shape = 'u32[]', space=smem, size = 0x4, offset = 0x4, fixed_abs, tag = 'smem constant byte address 0x4 - core index']
  #allocation1 [shape = 'u32[72,128]{1,0:T(1,128)}', space=vmem, size = 0x9000, scoped, tag = 'internal scratch']
  #allocation2 [shape = 'f32[16,32]{1,0:T(8,128)}', space=vmem, size = 0x2000, scoped, tag = 'scratch operand']
  %s0 = inlined_call_operand.vmem [shape: f32[16,32], index: 0, kind: input, shape index: {}]
  %s1 = inlined_call_operand.vmem [shape: bf16[32,64], index: 1, kind: input, shape index: {}]
  %s2 = inlined_call_operand.vmem [shape: f32[1,64], index: 2, kind: input, shape index: {}]
  %s3 = inlined_call_operand.vmem [shape: bf16[64,32], index: 3, kind: input, shape index: {}]
  %s4 = inlined_call_operand.vmem [shape: f32[1,32], index: 4, kind: input, shape index: {}]
  %s5 = inlined_call_operand.hbm [shape: f32[16,32], index: 5, kind: output, shape index: {}]
  %s6 = sld [smem:[#allocation0]]
  $region38: #{tpu_custom_call.1} parent=0
    _
  %s8 = ssub.s32 1, %s6
  %s9 = scalar_select 0, %s8, %s6
  $region1: #{tpu_custom_call.1} parent=0
    #allocation3 [shape = 'u8[8192]{0}', space=vmem, size = 0x2000, scoped, tag = 'output window, operand 0, single buffered']
    #allocation4 [shape = 's32[1]{0}', space=sflag, size = 0x4, scoped, tag = 'scoped memory for tpu_custom_call.1']
    %10 = vsyncpa [#allocation4], 0
    // Predicated region
    $region2: #{tpu_custom_call.1} parent=1 // pred_check
      _
    $region3: #{tpu_custom_call.1} parent=1 // pred_check_branch
      %12 = sbr.rel (0) target = $region5
    $region4: #{tpu_custom_call.1} parent=1 // pred_region
      _
    $region5: #{tpu_custom_call.1} parent=1 // pred_fallthru
      _
    // Predicated region
    $region6: #{tpu_custom_call.1} parent=1 // pred_check
      _
    $region7: #{tpu_custom_call.1} parent=1 // pred_check_branch
      %14 = sbr.rel (0) target = $region9
    $region8: #{tpu_custom_call.1} parent=1 // pred_region
      _
    $region9: #{tpu_custom_call.1} parent=1 // pred_fallthru
      _
    // Predicated region
    $region10: #{tpu_custom_call.1} parent=1 // pred_check
      _
    $region11: #{tpu_custom_call.1} parent=1 // pred_check_branch
      %16 = sbr.rel (0) target = $region13
    $region12: #{tpu_custom_call.1} parent=1 // pred_region
      _
    $region13: #{tpu_custom_call.1} parent=1 // pred_fallthru
      _
    // Predicated region
    $region14: #{tpu_custom_call.1} parent=1 // pred_check
      _
    $region15: #{tpu_custom_call.1} parent=1 // pred_check_branch
      %18 = sbr.rel (0) target = $region17
    $region16: #{tpu_custom_call.1} parent=1 // pred_region
      _
    $region17: #{tpu_custom_call.1} parent=1 // pred_fallthru
      _
    // Predicated region
    $region18: #{tpu_custom_call.1} parent=1 // pred_check
      _
    $region19: #{tpu_custom_call.1} parent=1 // pred_check_branch
      %20 = sbr.rel (0) target = $region21
    $region20: #{tpu_custom_call.1} parent=1 // pred_region
      _
    $region21: #{tpu_custom_call.1} parent=1 // pred_fallthru
      _
    %p22 = scmp.eq.s32.totalorder 0, 0
    // Predicated region
    $region22: #{tpu_custom_call.1} parent=1 // pred_check
      %p23 = pneg %p22
    $region23: #{tpu_custom_call.1} parent=1 // pred_check_branch
      %25 = sbr.rel (%p23) target = $region25
    $region24: #{tpu_custom_call.1} parent=1 // pred_region
      %vm26 = vcmask 261120
      %27 = vst.msk [vmem:[#allocation2] sm:$0xff] %vm26, 0.0
      %28 = vst.msk [vmem:[#allocation2 + $0x8] sm:$0xff] %vm26, 0.0
    $region25: #{tpu_custom_call.1} parent=1 // pred_fallthru
      _
    %v29 = vld [vmem:[%s0] sm:$0xff]
    %v30 = vld [vmem:[%s0 + $0x8] sm:$0xff]
    %v31 = vpack.c.bf16 %v30, %v29
    %v32 = vld [vmem:[%s1] sm:$0xf]
    %v33 = vld [vmem:[%s1 + $0x4] sm:$0xf]
    %v34 = vld [vmem:[%s1 + $0x8] sm:$0xf]
    %v35 = vld [vmem:[%s1 + $0xc] sm:$0xf]
    %v36 = vld [vmem:[%s2] sm:$0x1]
    %v38 = vperm.slane %v36, 0
    %v44 = vunpack.c.l.b16 %v32
    %v45 = vunpack.c.l.b16 %v33
    %v46 = vunpack.c.l.b16 %v34
    %v47 = vunpack.c.l.b16 %v35
    %v48 = vpack.c.b16 %v45, %v44
    %v49 = vpack.c.b16 %v47, %v46
    %vm52 = vcmask 261120
    %v54 = vsel %vm52, %v31, 0
    %56 = vmatpush.bf16.msra.mxu0 0
    %57 = vmatpush.bf16.msra.mxu0 0
    %58 = vmatpush.bf16.msra.mxu0 0
    %59 = vmatpush.bf16.msra.mxu0 0
    %60 = vmatpush.bf16.msra.mxu0 0
    %61 = vmatpush.bf16.msra.mxu0 0
    %62 = vmatpush.bf16.msra.mxu0 %v49
    %63 = vmatpush.bf16.msra.mxu0 %v48
    %64 = vmatmul.bf16.gmra.mxu0 %v54
    %v65 = vpop.f32.mrf.mxu0
    %v66 = vadd.f32 %v38, %v65
    %v67 = vpop.f32.mrf.mxu0
    %v68 = vadd.f32 %v38, %v67
    %69 = vdwg.mxu0
    %v70 = vmul.f32 %v66, 0.5
    %v71 = vmul.f32 %v68, 0.5
    %v72 = vmul.f32 %v66, 0.70710677
    %v73 = vmul.f32 %v68, 0.70710677
    %v74 = vmul.f32 %v72, %v72
    %v75 = vmin.f32 16.0, %v74
    %v76 = vmul.f32 %v75, 2.1237322e-06
    %v77 = vadd.f32 %v76, 0.00028619796
    %v78 = vmul.f32 %v75, %v77
    %v79 = vadd.f32 %v78, 0.0036580483
    %v80 = vmul.f32 %v75, %v79
    %v81 = vadd.f32 %v80, 0.05243302
    %v82 = vmul.f32 %v75, %v81
    %v83 = vadd.f32 %v82, 0.18741608
    %v84 = vmul.f32 %v75, %v83
    %v85 = vadd.f32 %v84, 1.1283791
    %v86 = vmul.f32 %v72, %v85
    %v87 = vmul.f32 %v75, 3.8918573e-05
    %v88 = vadd.f32 %v87, 0.001143296
    %v89 = vmul.f32 %v75, %v88
    %v90 = vadd.f32 %v89, 0.014752088
    %v91 = vmul.f32 %v75, %v90
    %v92 = vadd.f32 %v91, 0.112945676
    %v93 = vmul.f32 %v75, %v92
    %v94 = vadd.f32 %v93, 0.4994258
    %v95 = vmul.f32 %v75, %v94
    %v96 = vadd.f32 %v95, 1.0
    %v97 = vrcp.pop %v96
    %v98 = vmul.f32 %v96, %v97
    %v99 = vsub.f32 1.0, %v98
    %v100 = vmul.f32 %v97, %v99
    %v101 = vadd.f32 %v97, %v100
    %vm102 = vweird.f32 %v96
    %vm103 = vweird.f32 %v97
    %vm104 = vmor %vm102, %vm103
    %v105 = vsel %vm104, %v97, %v101
    %v106 = vand.u32 2147483647, %v96
    %vm107 = vcmp.eq.f32.partialorder %v106, 8.507059e+37
    %v108 = vand.u32 %v96, 2147483648
    %v109 = vor.u32 1.1754944e-38, %v108
    %v110 = vsel %vm107, %v109, %v105
    %v111 = vmul.f32 %v86, %v110
    %v112 = vmin.f32 %v111, 1.0
    %v113 = vmax.f32 %v112, -1.0
    %v114 = vmul.f32 %v73, %v73
    %v115 = vmin.f32 16.0, %v114
    %v116 = vmul.f32 %v115, 2.1237322e-06
    %v117 = vadd.f32 %v116, 0.00028619796
    %v118 = vmul.f32 %v115, %v117
    %v119 = vadd.f32 %v118, 0.0036580483
    %v120 = vmul.f32 %v115, %v119
    %v121 = vadd.f32 %v120, 0.05243302
    %v122 = vmul.f32 %v115, %v121
    %v123 = vadd.f32 %v122, 0.18741608
    %v124 = vmul.f32 %v115, %v123
    %v125 = vadd.f32 %v124, 1.1283791
    %v126 = vmul.f32 %v73, %v125
    %v127 = vmul.f32 %v115, 3.8918573e-05
    %v128 = vadd.f32 %v127, 0.001143296
    %v129 = vmul.f32 %v115, %v128
    %v130 = vadd.f32 %v129, 0.014752088
    %v131 = vmul.f32 %v115, %v130
    %v132 = vadd.f32 %v131, 0.112945676
    %v133 = vmul.f32 %v115, %v132
    %v134 = vadd.f32 %v133, 0.4994258
    %v135 = vmul.f32 %v115, %v134
    %v136 = vadd.f32 %v135, 1.0
    %v137 = vrcp.pop %v136
    %v138 = vmul.f32 %v136, %v137
    %v139 = vsub.f32 1.0, %v138
    %v140 = vmul.f32 %v137, %v139
    %v141 = vadd.f32 %v137, %v140
    %vm142 = vweird.f32 %v136
    %vm143 = vweird.f32 %v137
    %vm144 = vmor %vm142, %vm143
    %v145 = vsel %vm144, %v137, %v141
    %v146 = vand.u32 2147483647, %v136
    %vm147 = vcmp.eq.f32.partialorder %v146, 8.507059e+37
    %v148 = vand.u32 %v136, 2147483648
    %v149 = vor.u32 1.1754944e-38, %v148
    %v150 = vsel %vm147, %v149, %v145
    %v151 = vmul.f32 %v126, %v150
    %v152 = vmin.f32 %v151, 1.0
    %v153 = vmax.f32 %v152, -1.0
    %v154 = vadd.f32 %v113, 1.0
    %v155 = vadd.f32 %v153, 1.0
    %v156 = vmul.f32 %v70, %v154
    %v157 = vmul.f32 %v71, %v155
    %v158 = vld [vmem:[#allocation2] sm:$0xff]
    %v159 = vld [vmem:[#allocation2 + $0x8] sm:$0xff]
    %v160 = vpack.c.bf16 %v157, %v156
    %v161 = vld [vmem:[%s3] sm:$0xf]
    %v162 = vld [vmem:[%s3 + $0x4] sm:$0xf]
    %v163 = vld [vmem:[%s3 + $0x8] sm:$0xf]
    %v164 = vld [vmem:[%s3 + $0xc] sm:$0xf]
    %v165 = vld [vmem:[%s3 + $0x10] sm:$0xf]
    %v166 = vld [vmem:[%s3 + $0x14] sm:$0xf]
    %v167 = vld [vmem:[%s3 + $0x18] sm:$0xf]
    %v168 = vld [vmem:[%s3 + $0x1c] sm:$0xf]
    %v177 = vunpack.c.l.b16 %v161
    %v178 = vunpack.c.l.b16 %v162
    %v179 = vunpack.c.l.b16 %v163
    %v180 = vunpack.c.l.b16 %v164
    %v181 = vunpack.c.l.b16 %v165
    %v182 = vunpack.c.l.b16 %v166
    %v183 = vunpack.c.l.b16 %v167
    %v184 = vunpack.c.l.b16 %v168
    %v185 = vpack.c.b16 %v178, %v177
    %v186 = vpack.c.b16 %v180, %v179
    %v187 = vpack.c.b16 %v182, %v181
    %v188 = vpack.c.b16 %v184, %v183
    %vm193 = vcmask 523264
    %v195 = vsel %vm193, %v160, 0
    %197 = vmatpush.bf16.msra.mxu0 0
    %198 = vmatpush.bf16.msra.mxu0 0
    %199 = vmatpush.bf16.msra.mxu0 0
    %200 = vmatpush.bf16.msra.mxu0 0
    %201 = vmatpush.bf16.msra.mxu0 %v188
    %202 = vmatpush.bf16.msra.mxu0 %v187
    %203 = vmatpush.bf16.msra.mxu0 %v186
    %204 = vmatpush.bf16.msra.mxu0 %v185
    %205 = vmatmul.bf16.gmra.mxu0 %v195
    %v206 = vpop.f32.mrf.mxu0
    %v207 = vadd.f32 0.0, %v206
    %v208 = vpop.f32.mrf.mxu0
    %v209 = vadd.f32 0.0, %v208
    %210 = vdwg.mxu0
    %v211 = vadd.f32 %v158, %v207
    %v212 = vadd.f32 %v159, %v209
    %213 = vst.msk [vmem:[#allocation2] sm:$0xff] %vm52, %v211
    %214 = vst.msk [vmem:[#allocation2 + $0x8] sm:$0xff] %vm52, %v212
    // Predicated region
    $region26: #{tpu_custom_call.1} parent=1 // pred_check
      %p215 = pneg %p22
    $region27: #{tpu_custom_call.1} parent=1 // pred_check_branch
      %217 = sbr.rel (%p215) target = $region29
    $region28: #{tpu_custom_call.1} parent=1 // pred_region
      %v218 = vld [vmem:[#allocation2] sm:$0xff]
      %v219 = vld [vmem:[#allocation2 + $0x8] sm:$0xff]
      %v220 = vld [vmem:[%s4] sm:$0x1]
      %v222 = vperm.slane %v220, 0
      %v224 = vadd.f32 %v218, %v222
      %v225 = vadd.f32 %v219, %v222
      %226 = vst.msk [vmem:[#allocation3] sm:$0xff] %vm52, %v224
      %227 = vst.msk [vmem:[#allocation3 + $0x8] sm:$0xff] %vm52, %v225
    $region29: #{tpu_custom_call.1} parent=1 // pred_fallthru
      _
    // Predicated region
    $region30: #{tpu_custom_call.1} parent=1 // pred_check
      _
    $region31: #{tpu_custom_call.1} parent=1 // pred_check_branch
      %229 = sbr.rel (0) target = $region33
    $region32: #{tpu_custom_call.1} parent=1 // pred_region
      %231 = vsyncadd [#allocation4], 0
      %s232 = sshll.u32 [#allocation3], 4
      %s233 = int_to_ptr.vmem [resolvable:$true] %s232
      %s234 = sshll.u32 %s5, 4
      %s235 = int_to_ptr.hbm [resolvable:$true] %s234
      %240 = dma.vmem_to_hbm [thread:$0]  %s233, 256, %s235, [#allocation4], 128, 128, 8
    $region33: #{tpu_custom_call.1} parent=1 // pred_fallthru
      _
    // Predicated region
    $region34: #{tpu_custom_call.1} parent=1 // pred_check
      _
    $region35: #{tpu_custom_call.1} parent=1 // pred_check_branch
      %242 = sbr.rel (0) target = $region37
    $region36: #{tpu_custom_call.1} parent=1 // pred_region
      %244 = dma.done [#allocation4], 256
    $region37: #{tpu_custom_call.1} parent=1 // pred_fallthru
      _
    %245 = vsyncpa [#allocation4], 1

</llo_original>
